<compile_context>
chip_gen: v5e
topology: v5e:2x2
jax: 0.10.0
libtpu: 0.0.40
codegen_flags: <defaults>
</compile_context>

<pallas_src>
import functools

import jax
import jax.numpy as jnp
from jax.experimental import pallas as pl
from jax.experimental.pallas import tpu as pltpu


# ---------------------------------------------------------------------------
# Kernel 1: agg = A' @ x (accumulated over K tiles of the resident x),
#           h = agg @ W1 + b1, plus per-row-tile partial BN stats.
# ---------------------------------------------------------------------------
def _agg_linear1_kernel(adj_ref, x_ref, w1_ref, b1_ref,      # inputs
                        h_ref, stats_ref,                    # outputs
                        acc_ref,                             # VMEM scratch
                        *, n_valid, tm, tk):
    # Hoisted: grid queries must NOT be bound inside pl.when bodies.
    i = pl.program_id(0)
    k = pl.program_id(1)
    nk = pl.num_programs(1)

    @pl.when(k == 0)
    def _init():
        acc_ref[...] = jnp.zeros(acc_ref.shape, acc_ref.dtype)

    # adj tile (tm, tk) @ rows [k*tk, (k+1)*tk) of the VMEM-resident x.
    x_tile = x_ref[pl.ds(k * tk, tk), :]
    acc_ref[...] += jnp.dot(adj_ref[...], x_tile,
                            preferred_element_type=jnp.float32)

    @pl.when(k == nk - 1)
    def _finalize():
        agg = acc_ref[...]                                   # (tm, fp_in) f32
        h = jnp.dot(agg.astype(w1_ref.dtype), w1_ref[...],
                    preferred_element_type=jnp.float32) + b1_ref[...]
        h_ref[...] = h.astype(h_ref.dtype)                   # bf16 store (default)

        # Partial BN statistics in f32 (pre-cast), zero-padded rows masked.
        row_ids = i * tm + jax.lax.broadcasted_iota(jnp.int32, h.shape, 0)
        valid = (row_ids < n_valid).astype(jnp.float32)
        hv = h * valid
        s = jnp.sum(hv, axis=0, keepdims=True)               # (1, fp_out)
        ss = jnp.sum(hv * hv, axis=0, keepdims=True)         # (1, fp_out)
        rows = jax.lax.broadcasted_iota(jnp.int32, stats_ref.shape, 0)
        stats_ref[...] = (jnp.where(rows == 0, s, 0.0)
                          + jnp.where(rows == 1, ss, 0.0))


# ---------------------------------------------------------------------------
# Kernel 2: folded BatchNorm (h*scale + shift) -> ReLU -> Linear2, per row tile
# ---------------------------------------------------------------------------
def _bn_relu_linear2_kernel(h_ref, scale_ref, shift_ref, w2_ref, b2_ref,
                            out_ref):
    h = h_ref[...].astype(jnp.float32)
    hn = jnp.maximum(h * scale_ref[...] + shift_ref[...], 0.0)
    out = jnp.dot(hn.astype(w2_ref.dtype), w2_ref[...],
                  preferred_element_type=jnp.float32) + b2_ref[...]
    out_ref[...] = out.astype(out_ref.dtype)


# ---------------------------------------------------------------------------
# Host-side helpers
# ---------------------------------------------------------------------------
def _round_up(v, m):
    return ((v + m - 1) // m) * m


def _divisor_tiles(n_pad, preferred):
    """Multiples of 128 that divide n_pad, each <= max(128, preferred)."""
    cap = max(128, min(_round_up(preferred, 128), n_pad))
    return [t for t in range(128, cap + 1, 128) if n_pad % t == 0]


def _pick_tk(n_pad, preferred):
    return max(_divisor_tiles(n_pad, preferred))


def _pick_tm(n_pad, preferred):
    """Prefer even num_m (v7x dual-TC balance), then num_m>=2, then largest."""
    cands = _divisor_tiles(n_pad, preferred)
    even = [t for t in cands if (n_pad // t) % 2 == 0]
    multi = [t for t in cands if (n_pad // t) >= 2]
    for group in (even, multi, cands):
        if group:
            return max(group)
    return 128


def _vmem_limit_bytes():
    """Per-generation scoped VMEM budget (48 MiB on v7x, up to 112 MiB on
    v5e/v6e); conservative default if the query is unavailable."""
    cap = None
    try:
        info = pltpu.get_tpu_info()
        cap = getattr(info, "vmem_capacity_bytes", None)
    except Exception:
        cap = None
    if not cap:
        cap = 64 * 1024 * 1024
    return int(min(max(cap - 16 * 1024 * 1024, 32 * 1024 * 1024),
                   112 * 1024 * 1024))


# ---------------------------------------------------------------------------
# GINConv forward
# ---------------------------------------------------------------------------
def gin_conv(x, edge_index, edge_weight, params, *,
             operand_dtype=jnp.bfloat16, h_dtype=None, tm=512, tk=1024):
    """x: (N, Fin) f32; edge_index: (2, E) int32; edge_weight: (E,) f32/None."""
    if h_dtype is None:
        h_dtype = operand_dtype
    N, f_in = x.shape
    f_out = params["w1"].shape[1]

    row, col = edge_index[0], edge_index[1]
    if edge_weight is None:
        edge_weight = jnp.ones(row.shape, dtype=jnp.float32)

    # Lane-dense padding (keep at 128 multiples; do not pad to 256 — mem-bound).
    fp_in = _round_up(f_in, 128)
    fp_out = _round_up(f_out, 128)
    n_pad = _round_up(N, 128)
    tm = _pick_tm(n_pad, tm)
    tk = _pick_tk(n_pad, tk)
    num_m = n_pad // tm
    num_k = n_pad // tk
    op_bytes = jnp.dtype(operand_dtype).itemsize
    h_bytes = jnp.dtype(h_dtype).itemsize
    vmem_limit = _vmem_limit_bytes()

    # Dense adjacency with (1 + eps) * I folded in (f32 scatter-add, one cast).
    # TODO(synk): CSR + scalar-prefetch gather path to avoid O(N^2) densify.
    adj = jnp.zeros((n_pad, n_pad), jnp.float32)
    adj = adj.at[row, col].add(edge_weight.astype(jnp.float32))
    diag = jnp.arange(N)
    adj = adj.at[diag, diag].add(1.0 + params["eps"])
    adj = adj.astype(operand_dtype)

    xp = (jnp.zeros((n_pad, fp_in), jnp.float32)
          .at[:N, :f_in].set(x).astype(operand_dtype))
    w1 = (jnp.zeros((fp_in, fp_out), jnp.float32)
          .at[:f_in, :f_out].set(params["w1"]).astype(operand_dtype))
    b1 = jnp.zeros((1, fp_out), jnp.float32).at[:, :f_out].set(params["b1"])
    gamma = jnp.zeros((1, fp_out), jnp.float32).at[:, :f_out].set(params["gamma"])
    beta = jnp.zeros((1, fp_out), jnp.float32).at[:, :f_out].set(params["beta"])
    w2 = (jnp.zeros((fp_out, fp_out), jnp.float32)
          .at[:f_out, :f_out].set(params["w2"]).astype(operand_dtype))
    b2 = jnp.zeros((1, fp_out), jnp.float32).at[:, :f_out].set(params["b2"])

    # ---- Kernel 1: aggregation + Linear1 + partial BN stats ----------------
    kern1 = functools.partial(_agg_linear1_kernel, n_valid=N, tm=tm, tk=tk)
    flops1 = int(2 * n_pad * n_pad * fp_in + 2 * n_pad * fp_in * fp_out)
    bytes1 = int(n_pad * n_pad * op_bytes + n_pad * fp_in * op_bytes
                 + fp_in * fp_out * op_bytes + n_pad * fp_out * h_bytes)

    h, stats = pl.pallas_call(
        kern1,
        out_shape=(jax.ShapeDtypeStruct((n_pad, fp_out), h_dtype),
                   jax.ShapeDtypeStruct((num_m * 8, fp_out), jnp.float32)),
        grid_spec=pltpu.PrefetchScalarGridSpec(
            num_scalar_prefetch=0,
            grid=(num_m, num_k),
            in_specs=[
                pl.BlockSpec((tm, tk), lambda i, k: (i, k)),          # A tile
                pl.BlockSpec((n_pad, fp_in), lambda i, k: (0, 0)),    # x resident
                pl.BlockSpec((fp_in, fp_out), lambda i, k: (0, 0)),   # W1 resident
                pl.BlockSpec((1, fp_out), lambda i, k: (0, 0)),       # b1
            ],
            out_specs=[
                pl.BlockSpec((tm, fp_out), lambda i, k: (i, 0)),      # h
                pl.BlockSpec((8, fp_out), lambda i, k: (i, 0)),       # partial stats
            ],
            scratch_shapes=[pltpu.VMEM((tm, fp_in), jnp.float32)],
        ),
        compiler_params=pltpu.CompilerParams(
            dimension_semantics=("parallel", "arbitrary"),
            vmem_limit_bytes=vmem_limit),
        cost_estimate=pl.CostEstimate(
            flops=flops1, transcendentals=0, bytes_accessed=bytes1),
    )(adj, xp, w1, b1)

    # ---- Tiny cross-tile reduction + folded BN affine -----------------------
    stats = stats.reshape(num_m, 8, fp_out)
    total = jnp.sum(stats[:, 0, :], axis=0, keepdims=True)        # (1, fp_out)
    total_sq = jnp.sum(stats[:, 1, :], axis=0, keepdims=True)     # (1, fp_out)
    mean = total / N
    var = jnp.maximum(total_sq / N - mean * mean, 0.0)            # biased var
    inv_std = jax.lax.rsqrt(var + 1e-5)
    scale = gamma * inv_std
    shift = beta - mean * scale

    # ---- Kernel 2: folded BN -> ReLU -> Linear2 ------------------------------
    flops2 = int(2 * n_pad * fp_out * fp_out + 3 * n_pad * fp_out)
    bytes2 = int(n_pad * fp_out * (h_bytes + 4) + fp_out * fp_out * op_bytes)

    out = pl.pallas_call(
        _bn_relu_linear2_kernel,
        out_shape=jax.ShapeDtypeStruct((n_pad, fp_out), jnp.float32),
        grid_spec=pltpu.PrefetchScalarGridSpec(
            num_scalar_prefetch=0,
            grid=(num_m,),
            in_specs=[
                pl.BlockSpec((tm, fp_out), lambda i: (i, 0)),         # h tile
                pl.BlockSpec((1, fp_out), lambda i: (0, 0)),          # scale
                pl.BlockSpec((1, fp_out), lambda i: (0, 0)),          # shift
                pl.BlockSpec((fp_out, fp_out), lambda i: (0, 0)),     # W2 resident
                pl.BlockSpec((1, fp_out), lambda i: (0, 0)),          # b2
            ],
            out_specs=pl.BlockSpec((tm, fp_out), lambda i: (i, 0)),
        ),
        compiler_params=pltpu.CompilerParams(
            dimension_semantics=("parallel",),
            vmem_limit_bytes=vmem_limit),
        cost_estimate=pl.CostEstimate(
            flops=flops2, transcendentals=0, bytes_accessed=bytes2),
    )(h, scale, shift, w2, b2)

    return out[:N, :f_out]


# ---------------------------------------------------------------------------
# Params + pure-JAX reference
# ---------------------------------------------------------------------------
def init_params(key, in_features, out_features, eps=0.0):
    k1, k2, k3, k4 = jax.random.split(key, 4)
    s1 = 1.0 / jnp.sqrt(in_features)
    s2 = 1.0 / jnp.sqrt(out_features)
    return {
        "eps": jnp.float32(eps),
        # stored pre-transposed: (in, out) so the kernel does x @ W
        "w1": jax.random.uniform(k1, (in_features, out_features), jnp.float32, -s1, s1),
        "b1": jax.random.uniform(k2, (1, out_features), jnp.float32, -s1, s1),
        "gamma": jnp.ones((1, out_features), jnp.float32),
        "beta": jnp.zeros((1, out_features), jnp.float32),
        "w2": jax.random.uniform(k3, (out_features, out_features), jnp.float32, -s2, s2),
        "b2": jax.random.uniform(k4, (1, out_features), jnp.float32, -s2, s2),
    }


def reference(x, edge_index, edge_weight, params,
              operand_dtype=jnp.float32, h_dtype=None):
    """Mirrors the PyTorch forward (training-mode BN, biased variance).
    With operand_dtype=float32 this is the original module's math; with
    bfloat16 it mirrors the kernel's matmul-operand / h-storage dtype policy."""
    if h_dtype is None:
        h_dtype = operand_dtype
    hp = jax.lax.Precision.HIGHEST
    row, col = edge_index[0], edge_index[1]
    if edge_weight is None:
        edge_weight = jnp.ones(row.shape, dtype=jnp.float32)
    N = x.shape[0]
    adj = jnp.zeros((N, N), jnp.float32).at[row, col].add(
        edge_weight.astype(jnp.float32))
    adj = adj.at[jnp.arange(N), jnp.arange(N)].add(1.0 + params["eps"])
    agg = jnp.dot(adj.astype(operand_dtype), x.astype(operand_dtype),
                  preferred_element_type=jnp.float32, precision=hp)
    h = jnp.dot(agg.astype(operand_dtype), params["w1"].astype(operand_dtype),
                preferred_element_type=jnp.float32, precision=hp) + params["b1"]
    mean = jnp.mean(h, axis=0, keepdims=True)
    var = jnp.maximum(jnp.mean(h * h, axis=0, keepdims=True) - mean * mean, 0.0)
    inv_std = jax.lax.rsqrt(var + 1e-5)
    scale = params["gamma"] * inv_std
    shift = params["beta"] - mean * scale
    hq = h.astype(h_dtype).astype(jnp.float32)      # mirrors kernel-1 h store
    hn = jnp.maximum(hq * scale + shift, 0.0)
    return jnp.dot(hn.astype(operand_dtype), params["w2"].astype(operand_dtype),
                   preferred_element_type=jnp.float32, precision=hp) + params["b2"]


if __name__ == "__main__":
    N, E = 300, 2048          # exercises row padding (300 -> 384) + tiling
    IN_F, OUT_F = 32, 32

    key = jax.random.PRNGKey(0)
    kx, ke, kw, kp = jax.random.split(key, 4)

    x = jax.random.normal(kx, (N, IN_F), dtype=jnp.float32)
    edge_index = jax.random.randint(ke, (2, E), 0, N, dtype=jnp.int32)
    edge_weight = jax.random.uniform(kw, (E,), dtype=jnp.float32)

    params = init_params(kp, IN_F, OUT_F, eps=0.1)

    # --- bf16 operands (fast path), small tiles -> multi-tile grid + K accum -
    out_bf16 = jax.block_until_ready(
        gin_conv(x, edge_index, edge_weight, params,
                 operand_dtype=jnp.bfloat16, tm=128, tk=128))
    ref_bf16 = reference(x, edge_index, edge_weight, params,
                         operand_dtype=jnp.bfloat16)
    assert out_bf16.shape == (N, OUT_F)
    assert jnp.allclose(out_bf16, ref_bf16, atol=2e-3, rtol=2e-3), \
        "bf16 kernel mismatch vs reference"

    # --- f32 operands (original-module numerics), default large tiles --------
    out_f32 = jax.block_until_ready(
        gin_conv(x, edge_index, edge_weight, params,
                 operand_dtype=jnp.float32))
    ref_f32 = reference(x, edge_index, edge_weight, params,
                        operand_dtype=jnp.float32)
    assert out_f32.shape == (N, OUT_F)
    assert jnp.allclose(out_f32, ref_f32, atol=2e-3, rtol=2e-3), \
        "f32 kernel mismatch vs reference"

    print("KERNEL_OK")
</pallas_src>

<mosaic_0001>
module attributes {stable_mosaic.version = 11 : i64} {
  func.func @_agg_linear1_kernel(%arg0: i32, %arg1: i32, %arg2: memref<128x128xbf16, #tpu.memory_space<vmem>>, %arg3: memref<384x128xbf16, #tpu.memory_space<vmem>>, %arg4: memref<128x128xbf16, #tpu.memory_space<vmem>>, %arg5: memref<1x128xf32, #tpu.memory_space<vmem>>, %arg6: memref<128x128xbf16, #tpu.memory_space<vmem>>, %arg7: memref<8x128xf32, #tpu.memory_space<vmem>>, %arg8: memref<128x128xf32, #tpu.memory_space<vmem>>) attributes {dimension_semantics = [#tpu.dimension_semantics<parallel>, #tpu.dimension_semantics<arbitrary>], iteration_bounds = array<i64: 3, 3>, scalar_prefetch = 0 : i64, scratch_operands = 1 : i64, tpu.core_type = #tpu.core_type<tc>, window_params = [{transform_indices = @transform_0, window_bounds = array<i64: 128, 128>}, {pipeline_mode = #tpu.pipeline_mode<synchronous>, transform_indices = @transform_1, window_bounds = array<i64: 384, 128>}, {pipeline_mode = #tpu.pipeline_mode<synchronous>, transform_indices = @transform_2, window_bounds = array<i64: 128, 128>}, {pipeline_mode = #tpu.pipeline_mode<synchronous>, transform_indices = @transform_3, window_bounds = array<i64: 1, 128>}, {transform_indices = @transform_4, window_bounds = array<i64: 128, 128>}, {transform_indices = @transform_5, window_bounds = array<i64: 8, 128>}]} {
    %c0_i32 = arith.constant 0 : i32
    %0 = arith.cmpi eq, %arg1, %c0_i32 : i32
    %1 = arith.extui %0 : i1 to i32
    %c0_i32_0 = arith.constant 0 : i32
    %2 = arith.cmpi ne, %1, %c0_i32_0 : i32
    scf.if %2 {
      %cst_8 = arith.constant 0.000000e+00 : f32
      %14 = vector.broadcast %cst_8 : f32 to vector<128x128xf32>
      %c0_9 = arith.constant 0 : index
      %c0_10 = arith.constant 0 : index
      %15 = vector.load %arg8[%c0_9, %c0_10] : memref<128x128xf32, #tpu.memory_space<vmem>>, vector<128x128xf32>
      tpu.vector_store %arg8[%c0_9, %c0_10], %14 {strides = array<i32>} : memref<128x128xf32, #tpu.memory_space<vmem>>, vector<128x128xf32>,
    } else {
    }
    %c128_i32 = arith.constant 128 : i32
    %3 = arith.muli %arg1, %c128_i32 : i32
    %4 = arith.index_cast %3 : i32 to index
    %c0 = arith.constant 0 : index
    %5 = vector.load %arg3[%4, %c0] : memref<384x128xbf16, #tpu.memory_space<vmem>>, vector<128x128xbf16>
    %c0_1 = arith.constant 0 : index
    %c0_2 = arith.constant 0 : index
    %6 = vector.load %arg8[%c0_1, %c0_2] : memref<128x128xf32, #tpu.memory_space<vmem>>, vector<128x128xf32>
    %c0_3 = arith.constant 0 : index
    %c0_4 = arith.constant 0 : index
    %7 = vector.load %arg2[%c0_3, %c0_4] : memref<128x128xbf16, #tpu.memory_space<vmem>>, vector<128x128xbf16>
    %cst = arith.constant dense<0.000000e+00> : vector<128x128xf32>
    %8 = tpu.matmul %7, %5, %cst {dimension_numbers = #tpu.dot_dimension_numbers<[1], [0], [0], [1], [0, 0, 1, 1], [], []>} : vector<128x128xbf16>, vector<128x128xbf16>, vector<128x128xf32> -> vector<128x128xf32>
    %9 = arith.addf %6, %8 : vector<128x128xf32>
    %c0_5 = arith.constant 0 : index
    %c0_6 = arith.constant 0 : index
    %10 = vector.load %arg8[%c0_5, %c0_6] : memref<128x128xf32, #tpu.memory_space<vmem>>, vector<128x128xf32>
    tpu.vector_store %arg8[%c0_5, %c0_6], %9 {strides = array<i32>} : memref<128x128xf32, #tpu.memory_space<vmem>>, vector<128x128xf32>,
    %c2_i32 = arith.constant 2 : i32
    %11 = arith.cmpi eq, %arg1, %c2_i32 : i32
    %12 = arith.extui %11 : i1 to i32
    %c0_i32_7 = arith.constant 0 : i32
    %13 = arith.cmpi ne, %12, %c0_i32_7 : i32
    scf.if %13 {
      %c0_8 = arith.constant 0 : index
      %c0_9 = arith.constant 0 : index
      %14 = vector.load %arg8[%c0_8, %c0_9] : memref<128x128xf32, #tpu.memory_space<vmem>>, vector<128x128xf32>
      %15 = arith.truncf %14 : vector<128x128xf32> to vector<128x128xbf16>
      %c0_10 = arith.constant 0 : index
      %c0_11 = arith.constant 0 : index
      %16 = vector.load %arg4[%c0_10, %c0_11] : memref<128x128xbf16, #tpu.memory_space<vmem>>, vector<128x128xbf16>
      %cst_12 = arith.constant dense<0.000000e+00> : vector<128x128xf32>
      %17 = tpu.matmul %15, %16, %cst_12 {dimension_numbers = #tpu.dot_dimension_numbers<[1], [0], [0], [1], [0, 0, 1, 1], [], []>} : vector<128x128xbf16>, vector<128x128xbf16>, vector<128x128xf32> -> vector<128x128xf32>
      %c0_13 = arith.constant 0 : index
      %c0_14 = arith.constant 0 : index
      %18 = vector.load %arg5[%c0_13, %c0_14] : memref<1x128xf32, #tpu.memory_space<vmem>>, vector<1x128xf32>
      %19 = vector.broadcast %18 : vector<1x128xf32> to vector<128x128xf32>
      %20 = arith.addf %17, %19 : vector<128x128xf32>
      %21 = arith.truncf %20 : vector<128x128xf32> to vector<128x128xbf16>
      %c0_15 = arith.constant 0 : index
      %c0_16 = arith.constant 0 : index
      %22 = vector.load %arg6[%c0_15, %c0_16] : memref<128x128xbf16, #tpu.memory_space<vmem>>, vector<128x128xbf16>
      tpu.vector_store %arg6[%c0_15, %c0_16], %21 {strides = array<i32>} : memref<128x128xbf16, #tpu.memory_space<vmem>>, vector<128x128xbf16>,
      %c128_i32_17 = arith.constant 128 : i32
      %23 = arith.muli %arg0, %c128_i32_17 : i32
      %24 = tpu.iota {dimensions = array<i32: 0>} : vector<128x128xi32>
      %25 = vector.broadcast %23 : i32 to vector<128x128xi32>
      %26 = arith.addi %25, %24 : vector<128x128xi32>
      %c300_i32 = arith.constant 300 : i32
      %27 = vector.broadcast %c300_i32 : i32 to vector<128x128xi32>
      %28 = arith.cmpi slt, %26, %27 : vector<128x128xi32>
      %29 = arith.extui %28 : vector<128x128xi1> to vector<128x128xi32>
      %30 = arith.sitofp %29 : vector<128x128xi32> to vector<128x128xf32>
      %31 = arith.mulf %20, %30 : vector<128x128xf32>
      %cst_18 = arith.constant dense<0.000000e+00> : vector<128xf32>
      %32 = vector.multi_reduction <add>, %31, %cst_18 [0] : vector<128x128xf32> to vector<128xf32>
      %33 = vector.shape_cast %32 : vector<128xf32> to vector<1x128xf32>
      %34 = arith.mulf %31, %31 : vector<128x128xf32>
      %cst_19 = arith.constant dense<0.000000e+00> : vector<128xf32>
      %35 = vector.multi_reduction <add>, %34, %cst_19 [0] : vector<128x128xf32> to vector<128xf32>
      %36 = vector.shape_cast %35 : vector<128xf32> to vector<1x128xf32>
      %37 = tpu.iota {dimensions = array<i32: 0>} : vector<8x128xi32>
      %c0_i32_20 = arith.constant 0 : i32
      %38 = vector.broadcast %c0_i32_20 : i32 to vector<8x128xi32>
      %39 = arith.cmpi eq, %37, %38 : vector<8x128xi32>
      %cst_21 = arith.constant 0.000000e+00 : f32
      %40 = vector.shape_cast %33 : vector<1x128xf32> to vector<1x128xf32>
      %41 = vector.broadcast %40 : vector<1x128xf32> to vector<8x128xf32>
      %42 = vector.broadcast %cst_21 : f32 to vector<8x128xf32>
      %43 = arith.select %39, %41, %42 : vector<8x128xi1>, vector<8x128xf32>
      %c1_i32 = arith.constant 1 : i32
      %44 = vector.broadcast %c1_i32 : i32 to vector<8x128xi32>
      %45 = arith.cmpi eq, %37, %44 : vector<8x128xi32>
      %cst_22 = arith.constant 0.000000e+00 : f32
      %46 = vector.shape_cast %36 : vector<1x128xf32> to vector<1x128xf32>
      %47 = vector.broadcast %46 : vector<1x128xf32> to vector<8x128xf32>
      %48 = vector.broadcast %cst_22 : f32 to vector<8x128xf32>
      %49 = arith.select %45, %47, %48 : vector<8x128xi1>, vector<8x128xf32>
      %50 = arith.addf %43, %49 : vector<8x128xf32>
      %c0_23 = arith.constant 0 : index
      %c0_24 = arith.constant 0 : index
      %51 = vector.load %arg7[%c0_23, %c0_24] : memref<8x128xf32, #tpu.memory_space<vmem>>, vector<8x128xf32>
      tpu.vector_store %arg7[%c0_23, %c0_24], %50 {strides = array<i32>} : memref<8x128xf32, #tpu.memory_space<vmem>>, vector<8x128xf32>,
    } else {
    }
    return
  }
  func.func @transform_0(%arg0: i32, %arg1: i32) -> (i32, i32) {
    %c0_i32 = arith.constant 0 : i32
    return %arg0, %arg1 : i32, i32
  }
  func.func @transform_1(%arg0: i32, %arg1: i32) -> (i32, i32) {
    %c0_i32 = arith.constant 0 : i32
    %c0_i32_0 = arith.constant 0 : i32
    %c0_i32_1 = arith.constant 0 : i32
    return %c0_i32, %c0_i32_0 : i32, i32
  }
  func.func @transform_2(%arg0: i32, %arg1: i32) -> (i32, i32) {
    %c0_i32 = arith.constant 0 : i32
    %c0_i32_0 = arith.constant 0 : i32
    %c0_i32_1 = arith.constant 0 : i32
    return %c0_i32, %c0_i32_0 : i32, i32
  }
  func.func @transform_3(%arg0: i32, %arg1: i32) -> (i32, i32) {
    %c0_i32 = arith.constant 0 : i32
    %c0_i32_0 = arith.constant 0 : i32
    %c0_i32_1 = arith.constant 0 : i32
    return %c0_i32, %c0_i32_0 : i32, i32
  }
  func.func @transform_4(%arg0: i32, %arg1: i32) -> (i32, i32) {
    %c0_i32 = arith.constant 0 : i32
    %c0_i32_0 = arith.constant 0 : i32
    return %arg0, %c0_i32 : i32, i32
  }
  func.func @transform_5(%arg0: i32, %arg1: i32) -> (i32, i32) {
    %c0_i32 = arith.constant 0 : i32
    %c0_i32_0 = arith.constant 0 : i32
    return %arg0, %c0_i32 : i32, i32
  }
}

</mosaic_0001>

<llo_original>
// kernel: tpu_custom_call.1
$region0: #{tpu_custom_call.1}
  #allocation0 [shape = 'u32[]', space=smem, size = 0x4, offset = 0x4, fixed_abs, tag = 'smem constant byte address 0x4 - core index']
  #allocation1 [shape = 'u32[72,128]{1,0:T(1,128)}', space=vmem, size = 0x9000, scoped, tag = 'internal scratch']
  #allocation2 [shape = 'f32[128,128]{1,0:T(8,128)}', space=vmem, size = 0x10000, scoped, tag = 'scratch operand']
  %s0 = inlined_call_operand.hbm [shape: bf16[384,384], index: 0, kind: input, shape index: {}]
  %s1 = inlined_call_operand.hbm [shape: bf16[384,128], index: 1, kind: input, shape index: {}]
  %s2 = inlined_call_operand.hbm [shape: bf16[128,128], index: 2, kind: input, shape index: {}]
  %s3 = inlined_call_operand.vmem [shape: f32[1,128], index: 3, kind: input, shape index: {}]
  %s4 = inlined_call_operand.hbm [shape: bf16[384,128], index: 4, kind: output, shape index: {0}]
  %s5 = inlined_call_operand.hbm [shape: f32[24,128], index: 5, kind: output, shape index: {1}]
  %6 = xla_tuple %s4, %s5
  %s7 = sld [smem:[#allocation0]]
  $region77: #{tpu_custom_call.1} parent=0
    _
  %s9 = ssub.s32 1, %s7
  %s10 = scalar_select 0, %s9, %s7
  $region1: #{tpu_custom_call.1} parent=0
    #allocation3 [shape = 'u8[65536]{0}', space=vmem, size = 0x10000, scoped, tag = 'input window, operand 0']
    #allocation4 [shape = 's32[2]{0}', space=sflag, size = 0x8, scoped, tag = 'scoped memory for tpu_custom_call.1']
    #allocation5 [shape = 's32[2]{0}', space=sflag, size = 0x8, scoped, tag = 'scoped memory for tpu_custom_call.1']
    #allocation6 [shape = 'u8[98304]{0}', space=vmem, size = 0x18000, scoped, tag = 'input window, operand 1, single buffered']
    #allocation7 [shape = 's32[1]{0}', space=sflag, size = 0x4, scoped, tag = 'scoped memory for tpu_custom_call.1']
    #allocation8 [shape = 'u8[32768]{0}', space=vmem, size = 0x8000, scoped, tag = 'input window, operand 2, single buffered']
    #allocation9 [shape = 'u8[65536]{0}', space=vmem, size = 0x10000, scoped, tag = 'output window, operand 0']
    #allocation10 [shape = 'u8[8192]{0}', space=vmem, size = 0x2000, scoped, tag = 'output window, operand 1']
    #allocation11 [shape = 's32[2]{0}', space=sflag, size = 0x8, scoped, tag = 'scoped memory for tpu_custom_call.1']
    %11 = vsyncpa [#allocation4], 0
    %s12 = scalar_lea.sflag [#allocation4], 1
    %13 = vsyncpa %s12, 0
    %14 = vsyncpa [#allocation7], 0
    %15 = vsyncpa [#allocation5], 0
    %s16 = scalar_lea.sflag [#allocation5], 1
    %17 = vsyncpa %s16, 0
    %18 = vsyncpa [#allocation11], 0
    %s19 = scalar_lea.sflag [#allocation11], 1
    %20 = vsyncpa %s19, 0
    loop: start=0, step=1, limit=11
    $region2: #{tpu_custom_call.1} parent=1 // loop_pre_header
      _
    $region3: #{tpu_custom_call.1} parent=1 // loop_header
      %s22 = sphi 0, %s26
      %p23 = scmp.ge.s32.totalorder %s22, 11
      %s29 = sphi 0, %s41
      %s30 = sphi 0, %s37
      %s31 = sphi 0, %s29
      %s32 = sphi 0, %s30
      %s33 = sphi 0, %s31
      %s34 = sphi 0, %s32
      %s46 = sphi 0, %s48
      %s49 = sphi 0, %s46
      %s50 = sphi 0, %s49
      %s66 = sphi 0, %s50
      %s70 = sphi 0, %s70
      %s72 = sphi 0, %s70
      %s73 = sphi 0, %s72
      %s87 = sphi 0, %s73
      %s91 = sphi 0, %s91
      %s93 = sphi 0, %s91
      %s94 = sphi 0, %s93
      %s108 = sphi 0, %s94
      %s112 = sphi 0, %s112
      %s114 = sphi 0, %s112
      %s115 = sphi 0, %s114
      %s129 = sphi 0, %s115
      %s135 = sphi 0, %s137
      %s138 = sphi 0, %s135
      %s139 = sphi 0, %s138
      %s155 = sphi 0, %s139
      %s161 = sphi 0, %s163
      %s164 = sphi 0, %s161
      %s165 = sphi 0, %s164
      %s181 = sphi 0, %s165
    $region4: #{tpu_custom_call.1} parent=1 // loop_header_branch
      %25 = sbr.rel (%p23) target = $region8
    $region5: #{tpu_custom_call.1} parent=1 // loop_body
      %s27 = ssub.s32 %s22, 1
      %s28 = ssub.s32 %s22, 2
      %s35 = sadd.s32 1, %s30
      %p36 = scmp.ge.s32.totalorder %s35, 3
      %s37 = scalar_select %p36, 0, %s35
      %s38 = sadd.s32 1, %s29
      %s39 = scalar_select %p36, %s38, %s29
      %p40 = scmp.ge.s32.totalorder %s39, 3
      %s41 = scalar_select %p40, 0, %s39
      %s42 = ssub.s32 %s29, %s41
      %s43 = ssub.s32 %s30, %s37
      %s44 = sor.u32 %s42, %s43
      %p45 = scmp.eq.s32.totalorder %s44, 0
      %s47 = sadd.s32 %s46, 1
      %s48 = scalar_select %p45, %s46, %s47
      %p51 = pneg %p45
      %p52 = scmp.eq.s32.totalorder %s22, 8
      %p53 = por %p51, %p52
      %p54 = scmp.ne.s32.totalorder %s46, %s49
      %p55 = scmp.eq.s32.totalorder %s22, 0
      %p56 = por %p54, %p55
      %p57 = scmp.ne.s32.totalorder %s46, %s49
      %p58 = scmp.eq.s32.totalorder %s27, 8
      %p59 = por %p57, %p58
      %p60 = scmp.ne.s32.totalorder %s49, %s50
      %p61 = scmp.eq.s32.totalorder %s27, 0
      %p62 = por %p60, %p61
      %p63 = scmp.ne.s32.totalorder %s49, %s50
      %p64 = scmp.eq.s32.totalorder %s28, 8
      %p65 = por %p63, %p64
      %p67 = scmp.ne.s32.totalorder %s50, %s66
      %p68 = scmp.eq.s32.totalorder %s28, 0
      %p69 = por %p67, %p68
      %s71 = sadd.s32 %s70, 1
      %p74 = scmp.eq.s32.totalorder %s22, 8
      %p75 = scmp.ne.s32.totalorder %s70, %s72
      %p76 = scmp.eq.s32.totalorder %s22, 0
      %p77 = por %p75, %p76
      %p78 = scmp.ne.s32.totalorder %s70, %s72
      %p79 = scmp.eq.s32.totalorder %s27, 8
      %p80 = por %p78, %p79
      %p81 = scmp.ne.s32.totalorder %s72, %s73
      %p82 = scmp.eq.s32.totalorder %s27, 0
      %p83 = por %p81, %p82
      %p84 = scmp.ne.s32.totalorder %s72, %s73
      %p85 = scmp.eq.s32.totalorder %s28, 8
      %p86 = por %p84, %p85
      %p88 = scmp.ne.s32.totalorder %s73, %s87
      %p89 = scmp.eq.s32.totalorder %s28, 0
      %p90 = por %p88, %p89
      %s92 = sadd.s32 %s91, 1
      %p95 = scmp.eq.s32.totalorder %s22, 8
      %p96 = scmp.ne.s32.totalorder %s91, %s93
      %p97 = scmp.eq.s32.totalorder %s22, 0
      %p98 = por %p96, %p97
      %p99 = scmp.ne.s32.totalorder %s91, %s93
      %p100 = scmp.eq.s32.totalorder %s27, 8
      %p101 = por %p99, %p100
      %p102 = scmp.ne.s32.totalorder %s93, %s94
      %p103 = scmp.eq.s32.totalorder %s27, 0
      %p104 = por %p102, %p103
      %p105 = scmp.ne.s32.totalorder %s93, %s94
      %p106 = scmp.eq.s32.totalorder %s28, 8
      %p107 = por %p105, %p106
      %p109 = scmp.ne.s32.totalorder %s94, %s108
      %p110 = scmp.eq.s32.totalorder %s28, 0
      %p111 = por %p109, %p110
      %s113 = sadd.s32 %s112, 1
      %p116 = scmp.eq.s32.totalorder %s22, 8
      %p117 = scmp.ne.s32.totalorder %s112, %s114
      %p118 = scmp.eq.s32.totalorder %s22, 0
      %p119 = por %p117, %p118
      %p120 = scmp.ne.s32.totalorder %s112, %s114
      %p121 = scmp.eq.s32.totalorder %s27, 8
      %p122 = por %p120, %p121
      %p123 = scmp.ne.s32.totalorder %s114, %s115
      %p124 = scmp.eq.s32.totalorder %s27, 0
      %p125 = por %p123, %p124
      %p126 = scmp.ne.s32.totalorder %s114, %s115
      %p127 = scmp.eq.s32.totalorder %s28, 8
      %p128 = por %p126, %p127
      %p130 = scmp.ne.s32.totalorder %s115, %s129
      %p131 = scmp.eq.s32.totalorder %s28, 0
      %p132 = por %p130, %p131
      %s133 = ssub.s32 %s29, %s41
      %p134 = scmp.eq.s32.totalorder %s133, 0
      %s136 = sadd.s32 %s135, 1
      %s137 = scalar_select %p134, %s135, %s136
      %p140 = pneg %p134
      %p141 = scmp.eq.s32.totalorder %s22, 8
      %p142 = por %p140, %p141
      %p143 = scmp.ne.s32.totalorder %s135, %s138
      %p144 = scmp.eq.s32.totalorder %s22, 0
      %p145 = por %p143, %p144
      %p146 = scmp.ne.s32.totalorder %s135, %s138
      %p147 = scmp.eq.s32.totalorder %s27, 8
      %p148 = por %p146, %p147
      %p149 = scmp.ne.s32.totalorder %s138, %s139
      %p150 = scmp.eq.s32.totalorder %s27, 0
      %p151 = por %p149, %p150
      %p152 = scmp.ne.s32.totalorder %s138, %s139
      %p153 = scmp.eq.s32.totalorder %s28, 8
      %p154 = por %p152, %p153
      %p156 = scmp.ne.s32.totalorder %s139, %s155
      %p157 = scmp.eq.s32.totalorder %s28, 0
      %p158 = por %p156, %p157
      %s159 = ssub.s32 %s29, %s41
      %p160 = scmp.eq.s32.totalorder %s159, 0
      %s162 = sadd.s32 %s161, 1
      %s163 = scalar_select %p160, %s161, %s162
      %p166 = pneg %p160
      %p167 = scmp.eq.s32.totalorder %s22, 8
      %p168 = por %p166, %p167
      %p169 = scmp.ne.s32.totalorder %s161, %s164
      %p170 = scmp.eq.s32.totalorder %s22, 0
      %p171 = por %p169, %p170
      %p172 = scmp.ne.s32.totalorder %s161, %s164
      %p173 = scmp.eq.s32.totalorder %s27, 8
      %p174 = por %p172, %p173
      %p175 = scmp.ne.s32.totalorder %s164, %s165
      %p176 = scmp.eq.s32.totalorder %s27, 0
      %p177 = por %p175, %p176
      %p178 = scmp.ne.s32.totalorder %s164, %s165
      %p179 = scmp.eq.s32.totalorder %s28, 8
      %p180 = por %p178, %p179
      %p182 = scmp.ne.s32.totalorder %s165, %s181
      %p183 = scmp.eq.s32.totalorder %s28, 0
      %p184 = por %p182, %p183
      %p185 = scmp.le.s32.totalorder 1, %s22
      %p186 = scmp.lt.s32.totalorder %s22, 10
      %p187 = pnand %p185, %p186
      %p188 = pneg %p187
      // Predicated region
      $region9: #{tpu_custom_call.1} parent=5 // pred_check
        _
      $region10: #{tpu_custom_call.1} parent=5 // pred_check_branch
        %190 = sbr.rel (%p187) target = $region12
      $region11: #{tpu_custom_call.1} parent=5 // pred_region
        %s191 = ssub.s32 %s22, 1
        // Predicated region
        $region13: #{tpu_custom_call.1} parent=11 // pred_check
          %p192 = pneg %p83
        $region14: #{tpu_custom_call.1} parent=11 // pred_check_branch
          %194 = sbr.rel (%p192) target = $region16
        $region15: #{tpu_custom_call.1} parent=11 // pred_region
          %196 = vsyncadd [#allocation7], 0
          %s197 = sshll.u32 %s1, 4
          %s198 = int_to_ptr.hbm [resolvable:$true] %s197
          %s199 = sshll.u32 [#allocation6], 4
          %s200 = int_to_ptr.vmem [resolvable:$true] %s199
          %205 = dma.hbm_to_vmem [thread:$0]  %s198, 3072, %s200, [#allocation7], 64, 64, 4
        $region16: #{tpu_custom_call.1} parent=11 // pred_fallthru
          _
        // Predicated region
        $region17: #{tpu_custom_call.1} parent=11 // pred_check
          %p206 = pneg %p104
        $region18: #{tpu_custom_call.1} parent=11 // pred_check_branch
          %208 = sbr.rel (%p206) target = $region20
        $region19: #{tpu_custom_call.1} parent=11 // pred_region
          %210 = vsyncadd [#allocation7], 0
          %s211 = sshll.u32 %s2, 4
          %s212 = int_to_ptr.hbm [resolvable:$true] %s211
          %s213 = sshll.u32 [#allocation8], 4
          %s214 = int_to_ptr.vmem [resolvable:$true] %s213
          %219 = dma.hbm_to_vmem [thread:$0]  %s212, 1024, %s214, [#allocation7], 64, 64, 4
        $region20: #{tpu_custom_call.1} parent=11 // pred_fallthru
          _
        // Predicated region
        $region21: #{tpu_custom_call.1} parent=11 // pred_check
          %p220 = pneg %p125
        $region22: #{tpu_custom_call.1} parent=11 // pred_check_branch
          %222 = sbr.rel (%p220) target = $region24
        $region23: #{tpu_custom_call.1} parent=11 // pred_region
          _
        $region24: #{tpu_custom_call.1} parent=11 // pred_fallthru
          _
      $region12: #{tpu_custom_call.1} parent=5 // pred_fallthru
        _
      %p223 = scmp.lt.s32.totalorder %s22, 9
      // Predicated region
      $region25: #{tpu_custom_call.1} parent=5 // pred_check
        %p224 = pneg %p223
      $region26: #{tpu_custom_call.1} parent=5 // pred_check_branch
        %226 = sbr.rel (%p224) target = $region28
      $region27: #{tpu_custom_call.1} parent=5 // pred_region
        // Predicated region
        $region29: #{tpu_custom_call.1} parent=27 // pred_check
          %p227 = pneg %p56
        $region30: #{tpu_custom_call.1} parent=27 // pred_check_branch
          %229 = sbr.rel (%p227) target = $region32
        $region31: #{tpu_custom_call.1} parent=27 // pred_region
          %s230 = sand.u32 %s46, 1
          %s231 = scalar_lea.sflag [#allocation4], %s230
          %s232 = sand.u32 %s46, 1
          %s233 = smul.addr %s232, 64
          %s234 = scalar_lea.vmem [#allocation3], %s233
          %s235 = smul.u32 16, %s29
          %237 = vsyncadd %s231, 0
          %s238 = smul.addr %s235, 3
          %s239 = sadd.s32 %s30, %s238
          %s240 = smul.addr %s239, 4
          %s241 = scalar_lea.hbm %s0, %s240
          %s242 = sshll.u32 %s241, 4
          %s243 = int_to_ptr.hbm [resolvable:$true] %s242
          %s244 = sshll.u32 %s234, 4
          %s245 = int_to_ptr.vmem [resolvable:$true] %s244
          %250 = dma.hbm_to_vmem [thread:$0]  %s243, 1024, %s245, %s231, 192, 64, 4
        $region32: #{tpu_custom_call.1} parent=27 // pred_fallthru
          _
      $region28: #{tpu_custom_call.1} parent=5 // pred_fallthru
        _
      %p251 = scmp.le.s32.totalorder 1, %s22
      %p252 = scmp.lt.s32.totalorder %s22, 10
      %p253 = pnand %p251, %p252
      %p254 = pneg %p253
      // Predicated region
      $region33: #{tpu_custom_call.1} parent=5 // pred_check
        _
      $region34: #{tpu_custom_call.1} parent=5 // pred_check_branch
        %256 = sbr.rel (%p253) target = $region36
      $region35: #{tpu_custom_call.1} parent=5 // pred_region
        %s257 = ssub.s32 %s22, 1
        %s258 = sand.u32 %s49, 1
        %s259 = scalar_lea.sflag [#allocation4], %s258
        %s260 = sand.u32 %s49, 1
        %s261 = smul.addr %s260, 64
        %s262 = scalar_lea.vmem [#allocation3], %s261
        // Predicated region
        $region37: #{tpu_custom_call.1} parent=35 // pred_check
          %p263 = pneg %p62
        $region38: #{tpu_custom_call.1} parent=35 // pred_check_branch
          %265 = sbr.rel (%p263) target = $region40
        $region39: #{tpu_custom_call.1} parent=35 // pred_region
          %267 = dma.done %s259, 1024
        $region40: #{tpu_custom_call.1} parent=35 // pred_fallthru
          _
        // Predicated region
        $region41: #{tpu_custom_call.1} parent=35 // pred_check
          %p268 = pneg %p83
        $region42: #{tpu_custom_call.1} parent=35 // pred_check_branch
          %270 = sbr.rel (%p268) target = $region44
        $region43: #{tpu_custom_call.1} parent=35 // pred_region
          %272 = dma.done [#allocation7], 3072
        $region44: #{tpu_custom_call.1} parent=35 // pred_fallthru
          _
        // Predicated region
        $region45: #{tpu_custom_call.1} parent=35 // pred_check
          %p273 = pneg %p104
        $region46: #{tpu_custom_call.1} parent=35 // pred_check_branch
          %275 = sbr.rel (%p273) target = $region48
        $region47: #{tpu_custom_call.1} parent=35 // pred_region
          %277 = dma.done [#allocation7], 1024
        $region48: #{tpu_custom_call.1} parent=35 // pred_fallthru
          _
        %s278 = sand.u32 %s49, 1
        %s279 = scalar_lea.sflag [#allocation4], %s278
        %s280 = sand.u32 %s49, 1
        %s281 = smul.addr %s280, 64
        %s282 = scalar_lea.vmem [#allocation3], %s281
        %p283 = pneg %p62
        %p284 = pneg %p59
        %p285 = pneg %p83
        %p286 = pneg %p80
        %p287 = pneg %p104
        %p288 = pneg %p101
        %p289 = pneg %p125
        %p290 = pneg %p122
        %p291 = pneg %p151
        %p292 = pneg %p148
        %s293 = sand.u32 %s138, 1
        %s294 = scalar_lea.sflag [#allocation5], %s293
        %s295 = sand.u32 %s138, 1
        %s296 = smul.addr %s295, 64
        %s297 = scalar_lea.vmem [#allocation9], %s296
        %p298 = pneg %p177
        %p299 = pneg %p174
        %s300 = sand.u32 %s164, 1
        %s301 = scalar_lea.sflag [#allocation11], %s300
        %s302 = sand.u32 %s164, 1
        %s303 = smul.addr %s302, 8
        %s304 = scalar_lea.vmem [#allocation10], %s303
        %s305 = smul.u32 16, %s31
        %s306 = smul.u32 16, %s31
        %p307 = scmp.eq.s32.totalorder %s32, 0
        // Predicated region
        $region49: #{tpu_custom_call.1} parent=35 // pred_check
          %p308 = pneg %p307
        $region50: #{tpu_custom_call.1} parent=35 // pred_check_branch
          %310 = sbr.rel (%p308) target = $region52
        $region51: #{tpu_custom_call.1} parent=35 // pred_region
          %311 = vst [vmem:[#allocation2] sm:$0xff] 0.0
          %312 = vst [vmem:[#allocation2 + $0x8] sm:$0xff] 0.0
          %313 = vst [vmem:[#allocation2 + $0x10] sm:$0xff] 0.0
          %314 = vst [vmem:[#allocation2 + $0x18] sm:$0xff] 0.0
          %315 = vst [vmem:[#allocation2 + $0x20] sm:$0xff] 0.0
          %316 = vst [vmem:[#allocation2 + $0x28] sm:$0xff] 0.0
          %317 = vst [vmem:[#allocation2 + $0x30] sm:$0xff] 0.0
          %318 = vst [vmem:[#allocation2 + $0x38] sm:$0xff] 0.0
          %319 = vst [vmem:[#allocation2 + $0x40] sm:$0xff] 0.0
          %320 = vst [vmem:[#allocation2 + $0x48] sm:$0xff] 0.0
          %321 = vst [vmem:[#allocation2 + $0x50] sm:$0xff] 0.0
          %322 = vst [vmem:[#allocation2 + $0x58] sm:$0xff] 0.0
          %323 = vst [vmem:[#allocation2 + $0x60] sm:$0xff] 0.0
          %324 = vst [vmem:[#allocation2 + $0x68] sm:$0xff] 0.0
          %325 = vst [vmem:[#allocation2 + $0x70] sm:$0xff] 0.0
          %326 = vst [vmem:[#allocation2 + $0x78] sm:$0xff] 0.0
        $region52: #{tpu_custom_call.1} parent=35 // pred_fallthru
          _
        %s327 = smul.u32 %s32, 128
        %s328 = sshra.s32 %s327, 3
        %s329 = sand.u32 %s327, 7
        %s330 = smul.addr %s328, 4
        %s331 = scalar_lea.vmem [#allocation6], %s330
        %v332 = vld [vmem:[%s331] sm:$0xf]
        %v333 = vld [vmem:[%s331 + $0x4] sm:$0xf]
        %v334 = vld [vmem:[%s331 + $0x8] sm:$0xf]
        %v335 = vld [vmem:[%s331 + $0xc] sm:$0xf]
        %v336 = vld [vmem:[%s331 + $0x10] sm:$0xf]
        %v337 = vld [vmem:[%s331 + $0x14] sm:$0xf]
        %v338 = vld [vmem:[%s331 + $0x18] sm:$0xf]
        %v339 = vld [vmem:[%s331 + $0x1c] sm:$0xf]
        %v340 = vld [vmem:[%s331 + $0x20] sm:$0xf]
        %v341 = vld [vmem:[%s331 + $0x24] sm:$0xf]
        %v342 = vld [vmem:[%s331 + $0x28] sm:$0xf]
        %v343 = vld [vmem:[%s331 + $0x2c] sm:$0xf]
        %v344 = vld [vmem:[%s331 + $0x30] sm:$0xf]
        %v345 = vld [vmem:[%s331 + $0x34] sm:$0xf]
        %v346 = vld [vmem:[%s331 + $0x38] sm:$0xf]
        %v347 = vld [vmem:[%s331 + $0x3c] sm:$0xf]
        %v348 = vld [vmem:[#allocation2] sm:$0xff]
        %v349 = vld [vmem:[#allocation2 + $0x8] sm:$0xff]
        %v350 = vld [vmem:[#allocation2 + $0x10] sm:$0xff]
        %v351 = vld [vmem:[#allocation2 + $0x18] sm:$0xff]
        %v352 = vld [vmem:[#allocation2 + $0x20] sm:$0xff]
        %v353 = vld [vmem:[#allocation2 + $0x28] sm:$0xff]
        %v354 = vld [vmem:[#allocation2 + $0x30] sm:$0xff]
        %v355 = vld [vmem:[#allocation2 + $0x38] sm:$0xff]
        %v356 = vld [vmem:[#allocation2 + $0x40] sm:$0xff]
        %v357 = vld [vmem:[#allocation2 + $0x48] sm:$0xff]
        %v358 = vld [vmem:[#allocation2 + $0x50] sm:$0xff]
        %v359 = vld [vmem:[#allocation2 + $0x58] sm:$0xff]
        %v360 = vld [vmem:[#allocation2 + $0x60] sm:$0xff]
        %v361 = vld [vmem:[#allocation2 + $0x68] sm:$0xff]
        %v362 = vld [vmem:[#allocation2 + $0x70] sm:$0xff]
        %v363 = vld [vmem:[#allocation2 + $0x78] sm:$0xff]
        %v364 = vld [vmem:[%s262] sm:$0xf]
        %v365 = vld [vmem:[%s262 + $0x4] sm:$0xf]
        %v366 = vld [vmem:[%s262 + $0x8] sm:$0xf]
        %v367 = vld [vmem:[%s262 + $0xc] sm:$0xf]
        %v368 = vld [vmem:[%s262 + $0x10] sm:$0xf]
        %v369 = vld [vmem:[%s262 + $0x14] sm:$0xf]
        %v370 = vld [vmem:[%s262 + $0x18] sm:$0xf]
        %v371 = vld [vmem:[%s262 + $0x1c] sm:$0xf]
        %v372 = vld [vmem:[%s262 + $0x20] sm:$0xf]
        %v373 = vld [vmem:[%s262 + $0x24] sm:$0xf]
        %v374 = vld [vmem:[%s262 + $0x28] sm:$0xf]
        %v375 = vld [vmem:[%s262 + $0x2c] sm:$0xf]
        %v376 = vld [vmem:[%s262 + $0x30] sm:$0xf]
        %v377 = vld [vmem:[%s262 + $0x34] sm:$0xf]
        %v378 = vld [vmem:[%s262 + $0x38] sm:$0xf]
        %v379 = vld [vmem:[%s262 + $0x3c] sm:$0xf]
        %v396 = vunpack.c.l.b16 %v364
        %v397 = vunpack.c.l.b16 %v365
        %v398 = vunpack.c.l.b16 %v366
        %v399 = vunpack.c.l.b16 %v367
        %v400 = vunpack.c.l.b16 %v368
        %v401 = vunpack.c.l.b16 %v369
        %v402 = vunpack.c.l.b16 %v370
        %v403 = vunpack.c.l.b16 %v371
        %v404 = vunpack.c.l.b16 %v372
        %v405 = vunpack.c.l.b16 %v373
        %v406 = vunpack.c.l.b16 %v374
        %v407 = vunpack.c.l.b16 %v375
        %v408 = vunpack.c.l.b16 %v376
        %v409 = vunpack.c.l.b16 %v377
        %v410 = vunpack.c.l.b16 %v378
        %v411 = vunpack.c.l.b16 %v379
        %v412 = vpack.c.b16 %v397, %v396
        %v413 = vpack.c.b16 %v399, %v398
        %v414 = vpack.c.b16 %v401, %v400
        %v415 = vpack.c.b16 %v403, %v402
        %v416 = vpack.c.b16 %v405, %v404
        %v417 = vpack.c.b16 %v407, %v406
        %v418 = vpack.c.b16 %v409, %v408
        %v419 = vpack.c.b16 %v411, %v410
        %v444 = vunpack.c.l.b16 %v332
        %v445 = vunpack.c.l.b16 %v333
        %v446 = vunpack.c.l.b16 %v334
        %v447 = vunpack.c.l.b16 %v335
        %v448 = vunpack.c.l.b16 %v336
        %v449 = vunpack.c.l.b16 %v337
        %v450 = vunpack.c.l.b16 %v338
        %v451 = vunpack.c.l.b16 %v339
        %v452 = vunpack.c.l.b16 %v340
        %v453 = vunpack.c.l.b16 %v341
        %v454 = vunpack.c.l.b16 %v342
        %v455 = vunpack.c.l.b16 %v343
        %v456 = vunpack.c.l.b16 %v344
        %v457 = vunpack.c.l.b16 %v345
        %v458 = vunpack.c.l.b16 %v346
        %v459 = vunpack.c.l.b16 %v347
        %v460 = vpack.c.b16 %v445, %v444
        %v461 = vpack.c.b16 %v447, %v446
        %v462 = vpack.c.b16 %v449, %v448
        %v463 = vpack.c.b16 %v451, %v450
        %v464 = vpack.c.b16 %v453, %v452
        %v465 = vpack.c.b16 %v455, %v454
        %v466 = vpack.c.b16 %v457, %v456
        %v467 = vpack.c.b16 %v459, %v458
        %476 = vmatpush.bf16.msra.mxu0 %v467
        %477 = vmatpush.bf16.msra.mxu0 %v466
        %478 = vmatpush.bf16.msra.mxu0 %v465
        %479 = vmatpush.bf16.msra.mxu0 %v464
        %480 = vmatpush.bf16.msra.mxu0 %v463
        %481 = vmatpush.bf16.msra.mxu0 %v462
        %482 = vmatpush.bf16.msra.mxu0 %v461
        %483 = vmatpush.bf16.msra.mxu0 %v460
        %484 = vmatmul.bf16.gmra.mxu0 %v412
        %v485 = vpop.f32.mrf.mxu0
        %v486 = vadd.f32 0.0, %v485
        %v487 = vpop.f32.mrf.mxu0
        %v488 = vadd.f32 0.0, %v487
        %489 = vmatmul.bf16.gmra.mxu0 %v413
        %v490 = vpop.f32.mrf.mxu0
        %v491 = vadd.f32 0.0, %v490
        %v492 = vpop.f32.mrf.mxu0
        %v493 = vadd.f32 0.0, %v492
        %494 = vmatmul.bf16.gmra.mxu0 %v414
        %v495 = vpop.f32.mrf.mxu0
        %v496 = vadd.f32 0.0, %v495
        %v497 = vpop.f32.mrf.mxu0
        %v498 = vadd.f32 0.0, %v497
        %499 = vmatmul.bf16.gmra.mxu0 %v415
        %v500 = vpop.f32.mrf.mxu0
        %v501 = vadd.f32 0.0, %v500
        %v502 = vpop.f32.mrf.mxu0
        %v503 = vadd.f32 0.0, %v502
        %504 = vmatmul.bf16.gmra.mxu0 %v416
        %v505 = vpop.f32.mrf.mxu0
        %v506 = vadd.f32 0.0, %v505
        %v507 = vpop.f32.mrf.mxu0
        %v508 = vadd.f32 0.0, %v507
        %509 = vmatmul.bf16.gmra.mxu0 %v417
        %v510 = vpop.f32.mrf.mxu0
        %v511 = vadd.f32 0.0, %v510
        %v512 = vpop.f32.mrf.mxu0
        %v513 = vadd.f32 0.0, %v512
        %514 = vmatmul.bf16.gmra.mxu0 %v418
        %v515 = vpop.f32.mrf.mxu0
        %v516 = vadd.f32 0.0, %v515
        %v517 = vpop.f32.mrf.mxu0
        %v518 = vadd.f32 0.0, %v517
        %519 = vmatmul.bf16.gmra.mxu0 %v419
        %v520 = vpop.f32.mrf.mxu0
        %v521 = vadd.f32 0.0, %v520
        %v522 = vpop.f32.mrf.mxu0
        %v523 = vadd.f32 0.0, %v522
        %524 = vdwg.mxu0
        %v525 = vadd.f32 %v348, %v486
        %v526 = vadd.f32 %v349, %v488
        %v527 = vadd.f32 %v350, %v491
        %v528 = vadd.f32 %v351, %v493
        %v529 = vadd.f32 %v352, %v496
        %v530 = vadd.f32 %v353, %v498
        %v531 = vadd.f32 %v354, %v501
        %v532 = vadd.f32 %v355, %v503
        %v533 = vadd.f32 %v356, %v506
        %v534 = vadd.f32 %v357, %v508
        %v535 = vadd.f32 %v358, %v511
        %v536 = vadd.f32 %v359, %v513
        %v537 = vadd.f32 %v360, %v516
        %v538 = vadd.f32 %v361, %v518
        %v539 = vadd.f32 %v362, %v521
        %v540 = vadd.f32 %v363, %v523
        %541 = vst [vmem:[#allocation2] sm:$0xff] %v525
        %542 = vst [vmem:[#allocation2 + $0x8] sm:$0xff] %v526
        %543 = vst [vmem:[#allocation2 + $0x10] sm:$0xff] %v527
        %544 = vst [vmem:[#allocation2 + $0x18] sm:$0xff] %v528
        %545 = vst [vmem:[#allocation2 + $0x20] sm:$0xff] %v529
        %546 = vst [vmem:[#allocation2 + $0x28] sm:$0xff] %v530
        %547 = vst [vmem:[#allocation2 + $0x30] sm:$0xff] %v531
        %548 = vst [vmem:[#allocation2 + $0x38] sm:$0xff] %v532
        %549 = vst [vmem:[#allocation2 + $0x40] sm:$0xff] %v533
        %550 = vst [vmem:[#allocation2 + $0x48] sm:$0xff] %v534
        %551 = vst [vmem:[#allocation2 + $0x50] sm:$0xff] %v535
        %552 = vst [vmem:[#allocation2 + $0x58] sm:$0xff] %v536
        %553 = vst [vmem:[#allocation2 + $0x60] sm:$0xff] %v537
        %554 = vst [vmem:[#allocation2 + $0x68] sm:$0xff] %v538
        %555 = vst [vmem:[#allocation2 + $0x70] sm:$0xff] %v539
        %556 = vst [vmem:[#allocation2 + $0x78] sm:$0xff] %v540
        %p557 = scmp.eq.s32.totalorder %s32, 2
        // Predicated region
        $region53: #{tpu_custom_call.1} parent=35 // pred_check
          %p558 = pneg %p557
        $region54: #{tpu_custom_call.1} parent=35 // pred_check_branch
          %560 = sbr.rel (%p558) target = $region56
        $region55: #{tpu_custom_call.1} parent=35 // pred_region
          %v561 = vld [vmem:[#allocation2] sm:$0xff]
          %v562 = vld [vmem:[#allocation2 + $0x8] sm:$0xff]
          %v563 = vld [vmem:[#allocation2 + $0x10] sm:$0xff]
          %v564 = vld [vmem:[#allocation2 + $0x18] sm:$0xff]
          %v565 = vld [vmem:[#allocation2 + $0x20] sm:$0xff]
          %v566 = vld [vmem:[#allocation2 + $0x28] sm:$0xff]
          %v567 = vld [vmem:[#allocation2 + $0x30] sm:$0xff]
          %v568 = vld [vmem:[#allocation2 + $0x38] sm:$0xff]
          %v569 = vld [vmem:[#allocation2 + $0x40] sm:$0xff]
          %v570 = vld [vmem:[#allocation2 + $0x48] sm:$0xff]
          %v571 = vld [vmem:[#allocation2 + $0x50] sm:$0xff]
          %v572 = vld [vmem:[#allocation2 + $0x58] sm:$0xff]
          %v573 = vld [vmem:[#allocation2 + $0x60] sm:$0xff]
          %v574 = vld [vmem:[#allocation2 + $0x68] sm:$0xff]
          %v575 = vld [vmem:[#allocation2 + $0x70] sm:$0xff]
          %v576 = vld [vmem:[#allocation2 + $0x78] sm:$0xff]
          %v577 = vpack.c.bf16 %v562, %v561
          %v578 = vpack.c.bf16 %v564, %v563
          %v579 = vpack.c.bf16 %v566, %v565
          %v580 = vpack.c.bf16 %v568, %v567
          %v581 = vpack.c.bf16 %v570, %v569
          %v582 = vpack.c.bf16 %v572, %v571
          %v583 = vpack.c.bf16 %v574, %v573
          %v584 = vpack.c.bf16 %v576, %v575
          %v585 = vld [vmem:[#allocation8] sm:$0xf]
          %v586 = vld [vmem:[#allocation8 + $0x4] sm:$0xf]
          %v587 = vld [vmem:[#allocation8 + $0x8] sm:$0xf]
          %v588 = vld [vmem:[#allocation8 + $0xc] sm:$0xf]
          %v589 = vld [vmem:[#allocation8 + $0x10] sm:$0xf]
          %v590 = vld [vmem:[#allocation8 + $0x14] sm:$0xf]
          %v591 = vld [vmem:[#allocation8 + $0x18] sm:$0xf]
          %v592 = vld [vmem:[#allocation8 + $0x1c] sm:$0xf]
          %v593 = vld [vmem:[#allocation8 + $0x20] sm:$0xf]
          %v594 = vld [vmem:[#allocation8 + $0x24] sm:$0xf]
          %v595 = vld [vmem:[#allocation8 + $0x28] sm:$0xf]
          %v596 = vld [vmem:[#allocation8 + $0x2c] sm:$0xf]
          %v597 = vld [vmem:[#allocation8 + $0x30] sm:$0xf]
          %v598 = vld [vmem:[#allocation8 + $0x34] sm:$0xf]
          %v599 = vld [vmem:[#allocation8 + $0x38] sm:$0xf]
          %v600 = vld [vmem:[#allocation8 + $0x3c] sm:$0xf]
          %v601 = vld [vmem:[%s3] sm:$0x1]
          %v603 = vperm.slane %v601, 0
          %v621 = vunpack.c.l.b16 %v585
          %v622 = vunpack.c.l.b16 %v586
          %v623 = vunpack.c.l.b16 %v587
          %v624 = vunpack.c.l.b16 %v588
          %v625 = vunpack.c.l.b16 %v589
          %v626 = vunpack.c.l.b16 %v590
          %v627 = vunpack.c.l.b16 %v591
          %v628 = vunpack.c.l.b16 %v592
          %v629 = vunpack.c.l.b16 %v593
          %v630 = vunpack.c.l.b16 %v594
          %v631 = vunpack.c.l.b16 %v595
          %v632 = vunpack.c.l.b16 %v596
          %v633 = vunpack.c.l.b16 %v597
          %v634 = vunpack.c.l.b16 %v598
          %v635 = vunpack.c.l.b16 %v599
          %v636 = vunpack.c.l.b16 %v600
          %v637 = vpack.c.b16 %v622, %v621
          %v638 = vpack.c.b16 %v624, %v623
          %v639 = vpack.c.b16 %v626, %v625
          %v640 = vpack.c.b16 %v628, %v627
          %v641 = vpack.c.b16 %v630, %v629
          %v642 = vpack.c.b16 %v632, %v631
          %v643 = vpack.c.b16 %v634, %v633
          %v644 = vpack.c.b16 %v636, %v635
          %653 = vmatpush.bf16.msra.mxu0 %v644
          %654 = vmatpush.bf16.msra.mxu0 %v643
          %655 = vmatpush.bf16.msra.mxu0 %v642
          %656 = vmatpush.bf16.msra.mxu0 %v641
          %657 = vmatpush.bf16.msra.mxu0 %v640
          %658 = vmatpush.bf16.msra.mxu0 %v639
          %659 = vmatpush.bf16.msra.mxu0 %v638
          %660 = vmatpush.bf16.msra.mxu0 %v637
          %661 = vmatmul.bf16.gmra.mxu0 %v577
          %v662 = vpop.f32.mrf.mxu0
          %v663 = vadd.f32 %v603, %v662
          %v664 = vpop.f32.mrf.mxu0
          %v665 = vadd.f32 %v603, %v664
          %666 = vmatmul.bf16.gmra.mxu0 %v578
          %v667 = vpop.f32.mrf.mxu0
          %v668 = vadd.f32 %v603, %v667
          %v669 = vpop.f32.mrf.mxu0
          %v670 = vadd.f32 %v603, %v669
          %671 = vmatmul.bf16.gmra.mxu0 %v579
          %v672 = vpop.f32.mrf.mxu0
          %v673 = vadd.f32 %v603, %v672
          %v674 = vpop.f32.mrf.mxu0
          %v675 = vadd.f32 %v603, %v674
          %676 = vmatmul.bf16.gmra.mxu0 %v580
          %v677 = vpop.f32.mrf.mxu0
          %v678 = vadd.f32 %v603, %v677
          %v679 = vpop.f32.mrf.mxu0
          %v680 = vadd.f32 %v603, %v679
          %681 = vmatmul.bf16.gmra.mxu0 %v581
          %v682 = vpop.f32.mrf.mxu0
          %v683 = vadd.f32 %v603, %v682
          %v684 = vpop.f32.mrf.mxu0
          %v685 = vadd.f32 %v603, %v684
          %686 = vmatmul.bf16.gmra.mxu0 %v582
          %v687 = vpop.f32.mrf.mxu0
          %v688 = vadd.f32 %v603, %v687
          %v689 = vpop.f32.mrf.mxu0
          %v690 = vadd.f32 %v603, %v689
          %691 = vmatmul.bf16.gmra.mxu0 %v583
          %v692 = vpop.f32.mrf.mxu0
          %v693 = vadd.f32 %v603, %v692
          %v694 = vpop.f32.mrf.mxu0
          %v695 = vadd.f32 %v603, %v694
          %696 = vmatmul.bf16.gmra.mxu0 %v584
          %v697 = vpop.f32.mrf.mxu0
          %v698 = vadd.f32 %v603, %v697
          %v699 = vpop.f32.mrf.mxu0
          %v700 = vadd.f32 %v603, %v699
          %701 = vdwg.mxu0
          %v702 = vpack.c.bf16 %v663, %v663
          %v703 = vpack.c.bf16 %v665, %v665
          %v704 = vpack.c.bf16 %v668, %v668
          %v705 = vpack.c.bf16 %v670, %v670
          %v706 = vpack.c.bf16 %v673, %v673
          %v707 = vpack.c.bf16 %v675, %v675
          %v708 = vpack.c.bf16 %v678, %v678
          %v709 = vpack.c.bf16 %v680, %v680
          %v710 = vpack.c.bf16 %v683, %v683
          %v711 = vpack.c.bf16 %v685, %v685
          %v712 = vpack.c.bf16 %v688, %v688
          %v713 = vpack.c.bf16 %v690, %v690
          %v714 = vpack.c.bf16 %v693, %v693
          %v715 = vpack.c.bf16 %v695, %v695
          %v716 = vpack.c.bf16 %v698, %v698
          %v717 = vpack.c.bf16 %v700, %v700
          %718 = vst [vmem:[%s297] sm:$0xf] %v702
          %719 = vst [vmem:[%s297 + $0x4] sm:$0xf] %v703
          %720 = vst [vmem:[%s297 + $0x8] sm:$0xf] %v704
          %721 = vst [vmem:[%s297 + $0xc] sm:$0xf] %v705
          %722 = vst [vmem:[%s297 + $0x10] sm:$0xf] %v706
          %723 = vst [vmem:[%s297 + $0x14] sm:$0xf] %v707
          %724 = vst [vmem:[%s297 + $0x18] sm:$0xf] %v708
          %725 = vst [vmem:[%s297 + $0x1c] sm:$0xf] %v709
          %726 = vst [vmem:[%s297 + $0x20] sm:$0xf] %v710
          %727 = vst [vmem:[%s297 + $0x24] sm:$0xf] %v711
          %728 = vst [vmem:[%s297 + $0x28] sm:$0xf] %v712
          %729 = vst [vmem:[%s297 + $0x2c] sm:$0xf] %v713
          %730 = vst [vmem:[%s297 + $0x30] sm:$0xf] %v714
          %731 = vst [vmem:[%s297 + $0x34] sm:$0xf] %v715
          %732 = vst [vmem:[%s297 + $0x38] sm:$0xf] %v716
          %733 = vst [vmem:[%s297 + $0x3c] sm:$0xf] %v717
          %s734 = smul.u32 %s31, 128
          %v735 = vlaneseq
          %v736 = vshrl.u32 %v735, 7
          %v737 = vadd.s32 %v736, 8
          %v738 = vadd.s32 %v736, 16
          %v739 = vadd.s32 %v736, 24
          %v740 = vadd.s32 %v736, 32
          %v741 = vadd.s32 %v736, 40
          %v742 = vadd.s32 %v736, 48
          %v743 = vadd.s32 %v736, 56
          %v744 = vadd.s32 %v736, 64
          %v745 = vadd.s32 %v736, 72
          %v746 = vadd.s32 %v736, 80
          %v747 = vadd.s32 %v736, 88
          %v748 = vadd.s32 %v736, 96
          %v749 = vadd.s32 %v736, 104
          %v750 = vadd.s32 %v736, 112
          %v751 = vadd.s32 %v736, 120
          %v752 = vstv %s734
          %v753 = vadd.s32 %v752, %v736
          %v754 = vadd.s32 %v752, %v737
          %v755 = vadd.s32 %v752, %v738
          %v756 = vadd.s32 %v752, %v739
          %v757 = vadd.s32 %v752, %v740
          %v758 = vadd.s32 %v752, %v741
          %v759 = vadd.s32 %v752, %v742
          %v760 = vadd.s32 %v752, %v743
          %v761 = vadd.s32 %v752, %v744
          %v762 = vadd.s32 %v752, %v745
          %v763 = vadd.s32 %v752, %v746
          %v764 = vadd.s32 %v752, %v747
          %v765 = vadd.s32 %v752, %v748
          %v766 = vadd.s32 %v752, %v749
          %v767 = vadd.s32 %v752, %v750
          %v768 = vadd.s32 %v752, %v751
          %vm769 = vcmp.lt.s32.totalorder %v753, 300
          %vm770 = vcmp.lt.s32.totalorder %v754, 300
          %vm771 = vcmp.lt.s32.totalorder %v755, 300
          %vm772 = vcmp.lt.s32.totalorder %v756, 300
          %vm773 = vcmp.lt.s32.totalorder %v757, 300
          %vm774 = vcmp.lt.s32.totalorder %v758, 300
          %vm775 = vcmp.lt.s32.totalorder %v759, 300
          %vm776 = vcmp.lt.s32.totalorder %v760, 300
          %vm777 = vcmp.lt.s32.totalorder %v761, 300
          %vm778 = vcmp.lt.s32.totalorder %v762, 300
          %vm779 = vcmp.lt.s32.totalorder %v763, 300
          %vm780 = vcmp.lt.s32.totalorder %v764, 300
          %vm781 = vcmp.lt.s32.totalorder %v765, 300
          %vm782 = vcmp.lt.s32.totalorder %v766, 300
          %vm783 = vcmp.lt.s32.totalorder %v767, 300
          %vm784 = vcmp.lt.s32.totalorder %v768, 300
          %v785 = vsel %vm769, 1, 0
          %v786 = vsel %vm770, 1, 0
          %v787 = vsel %vm771, 1, 0
          %v788 = vsel %vm772, 1, 0
          %v789 = vsel %vm773, 1, 0
          %v790 = vsel %vm774, 1, 0
          %v791 = vsel %vm775, 1, 0
          %v792 = vsel %vm776, 1, 0
          %v793 = vsel %vm777, 1, 0
          %v794 = vsel %vm778, 1, 0
          %v795 = vsel %vm779, 1, 0
          %v796 = vsel %vm780, 1, 0
          %v797 = vsel %vm781, 1, 0
          %v798 = vsel %vm782, 1, 0
          %v799 = vsel %vm783, 1, 0
          %v800 = vsel %vm784, 1, 0
          %v801 = vcvt.s32.f32 %v785
          %v802 = vcvt.s32.f32 %v786
          %v803 = vcvt.s32.f32 %v787
          %v804 = vcvt.s32.f32 %v788
          %v805 = vcvt.s32.f32 %v789
          %v806 = vcvt.s32.f32 %v790
          %v807 = vcvt.s32.f32 %v791
          %v808 = vcvt.s32.f32 %v792
          %v809 = vcvt.s32.f32 %v793
          %v810 = vcvt.s32.f32 %v794
          %v811 = vcvt.s32.f32 %v795
          %v812 = vcvt.s32.f32 %v796
          %v813 = vcvt.s32.f32 %v797
          %v814 = vcvt.s32.f32 %v798
          %v815 = vcvt.s32.f32 %v799
          %v816 = vcvt.s32.f32 %v800
          %v817 = vmul.f32 %v663, %v801
          %v818 = vmul.f32 %v665, %v802
          %v819 = vmul.f32 %v668, %v803
          %v820 = vmul.f32 %v670, %v804
          %v821 = vmul.f32 %v673, %v805
          %v822 = vmul.f32 %v675, %v806
          %v823 = vmul.f32 %v678, %v807
          %v824 = vmul.f32 %v680, %v808
          %v825 = vmul.f32 %v683, %v809
          %v826 = vmul.f32 %v685, %v810
          %v827 = vmul.f32 %v688, %v811
          %v828 = vmul.f32 %v690, %v812
          %v829 = vmul.f32 %v693, %v813
          %v830 = vmul.f32 %v695, %v814
          %v831 = vmul.f32 %v698, %v815
          %v832 = vmul.f32 %v700, %v816
          %v833 = vadd.f32 %v817, %v818
          %v834 = vadd.f32 %v833, %v819
          %v835 = vadd.f32 %v834, %v820
          %v836 = vadd.f32 %v835, %v821
          %v837 = vadd.f32 %v836, %v822
          %v838 = vadd.f32 %v837, %v823
          %v839 = vadd.f32 %v838, %v824
          %v840 = vadd.f32 %v839, %v825
          %v841 = vadd.f32 %v840, %v826
          %v842 = vadd.f32 %v841, %v827
          %v843 = vadd.f32 %v842, %v828
          %v844 = vadd.f32 %v843, %v829
          %v845 = vadd.f32 %v844, %v830
          %v846 = vadd.f32 %v845, %v831
          %v847 = vadd.f32 %v846, %v832
          %v848 = vrot.slane %v847, 4
          %v849 = vadd.f32 %v847, %v848
          %v850 = vrot.slane %v849, 2
          %v851 = vadd.f32 %v849, %v850
          %v852 = vrot.slane %v851, 1
          %v853 = vadd.f32 %v851, %v852
          %v854 = vmul.f32 %v817, %v817
          %v855 = vmul.f32 %v818, %v818
          %v856 = vmul.f32 %v819, %v819
          %v857 = vmul.f32 %v820, %v820
          %v858 = vmul.f32 %v821, %v821
          %v859 = vmul.f32 %v822, %v822
          %v860 = vmul.f32 %v823, %v823
          %v861 = vmul.f32 %v824, %v824
          %v862 = vmul.f32 %v825, %v825
          %v863 = vmul.f32 %v826, %v826
          %v864 = vmul.f32 %v827, %v827
          %v865 = vmul.f32 %v828, %v828
          %v866 = vmul.f32 %v829, %v829
          %v867 = vmul.f32 %v830, %v830
          %v868 = vmul.f32 %v831, %v831
          %v869 = vmul.f32 %v832, %v832
          %v870 = vadd.f32 %v854, %v855
          %v871 = vadd.f32 %v870, %v856
          %v872 = vadd.f32 %v871, %v857
          %v873 = vadd.f32 %v872, %v858
          %v874 = vadd.f32 %v873, %v859
          %v875 = vadd.f32 %v874, %v860
          %v876 = vadd.f32 %v875, %v861
          %v877 = vadd.f32 %v876, %v862
          %v878 = vadd.f32 %v877, %v863
          %v879 = vadd.f32 %v878, %v864
          %v880 = vadd.f32 %v879, %v865
          %v881 = vadd.f32 %v880, %v866
          %v882 = vadd.f32 %v881, %v867
          %v883 = vadd.f32 %v882, %v868
          %v884 = vadd.f32 %v883, %v869
          %v885 = vrot.slane %v884, 4
          %v886 = vadd.f32 %v884, %v885
          %v887 = vrot.slane %v886, 2
          %v888 = vadd.f32 %v886, %v887
          %v889 = vrot.slane %v888, 1
          %v890 = vadd.f32 %v888, %v889
          %vm891 = vcmp.eq.s32.totalorder %v736, 0
          %v892 = vsel %vm891, %v853, 0.0
          %vm893 = vcmp.eq.s32.totalorder %v736, 1
          %v894 = vsel %vm893, %v890, 0.0
          %v895 = vadd.f32 %v892, %v894
          %896 = vst [vmem:[%s304] sm:$0xff] %v895
        $region56: #{tpu_custom_call.1} parent=35 // pred_fallthru
          _
        %s897 = sand.u32 %s138, 1
        %s898 = scalar_lea.sflag [#allocation5], %s897
        %s899 = sand.u32 %s138, 1
        %s900 = smul.addr %s899, 64
        %s901 = scalar_lea.vmem [#allocation9], %s900
        %s902 = sand.u32 %s164, 1
        %s903 = scalar_lea.sflag [#allocation11], %s902
        %s904 = sand.u32 %s164, 1
        %s905 = smul.addr %s904, 8
        %s906 = scalar_lea.vmem [#allocation10], %s905
        // Predicated region
        $region57: #{tpu_custom_call.1} parent=35 // pred_check
          %p907 = pneg %p148
        $region58: #{tpu_custom_call.1} parent=35 // pred_check_branch
          %909 = sbr.rel (%p907) target = $region60
        $region59: #{tpu_custom_call.1} parent=35 // pred_region
          %s910 = smul.u32 16, %s31
          %912 = vsyncadd %s898, 0
          %s913 = smul.addr %s910, 4
          %s914 = scalar_lea.hbm %s4, %s913
          %s915 = sshll.u32 %s901, 4
          %s916 = int_to_ptr.vmem [resolvable:$true] %s915
          %s917 = sshll.u32 %s914, 4
          %s918 = int_to_ptr.hbm [resolvable:$true] %s917
          %923 = dma.vmem_to_hbm [thread:$0]  %s916, 1024, %s918, %s898, 64, 64, 4
        $region60: #{tpu_custom_call.1} parent=35 // pred_fallthru
          _
        // Predicated region
        $region61: #{tpu_custom_call.1} parent=35 // pred_check
          %p924 = pneg %p174
        $region62: #{tpu_custom_call.1} parent=35 // pred_check_branch
          %926 = sbr.rel (%p924) target = $region64
        $region63: #{tpu_custom_call.1} parent=35 // pred_region
          %928 = vsyncadd %s903, 0
          %s929 = smul.addr %s31, 8
          %s930 = scalar_lea.hbm %s5, %s929
          %s932 = sshll.u32 %s906, 4
          %s933 = int_to_ptr.vmem [resolvable:$true] %s932
          %s934 = sshll.u32 %s930, 4
          %s935 = int_to_ptr.hbm [resolvable:$true] %s934
          %937 = dma.vmem_to_hbm [thread:$0]  %s933, 128, %s935, %s903
        $region64: #{tpu_custom_call.1} parent=35 // pred_fallthru
          _
      $region36: #{tpu_custom_call.1} parent=5 // pred_fallthru
        _
      %p938 = scmp.le.s32.totalorder 2, %s22
      // Predicated region
      $region65: #{tpu_custom_call.1} parent=5 // pred_check
        %p939 = pneg %p938
      $region66: #{tpu_custom_call.1} parent=5 // pred_check_branch
        %941 = sbr.rel (%p939) target = $region68
      $region67: #{tpu_custom_call.1} parent=5 // pred_region
        %s942 = ssub.s32 %s22, 2
        // Predicated region
        $region69: #{tpu_custom_call.1} parent=67 // pred_check
          %p943 = pneg %p154
        $region70: #{tpu_custom_call.1} parent=67 // pred_check_branch
          %945 = sbr.rel (%p943) target = $region72
        $region71: #{tpu_custom_call.1} parent=67 // pred_region
          %s946 = sand.u32 %s139, 1
          %s947 = scalar_lea.sflag [#allocation5], %s946
          %s948 = sand.u32 %s139, 1
          %s949 = smul.addr %s948, 64
          %s950 = scalar_lea.vmem [#allocation9], %s949
          %952 = dma.done %s947, 1024
        $region72: #{tpu_custom_call.1} parent=67 // pred_fallthru
          _
        // Predicated region
        $region73: #{tpu_custom_call.1} parent=67 // pred_check
          %p953 = pneg %p180
        $region74: #{tpu_custom_call.1} parent=67 // pred_check_branch
          %955 = sbr.rel (%p953) target = $region76
        $region75: #{tpu_custom_call.1} parent=67 // pred_region
          %s956 = sand.u32 %s165, 1
          %s957 = scalar_lea.sflag [#allocation11], %s956
          %s958 = sand.u32 %s165, 1
          %s959 = smul.addr %s958, 8
          %s960 = scalar_lea.vmem [#allocation10], %s959
          %962 = dma.done %s957, 128
        $region76: #{tpu_custom_call.1} parent=67 // pred_fallthru
          _
      $region68: #{tpu_custom_call.1} parent=5 // pred_fallthru
        _
    $region6: #{tpu_custom_call.1} parent=1 // loop_footer
      %s26 = sadd.s32 1, %s22
    $region7: #{tpu_custom_call.1} parent=1 // loop_footer_branch
      %21 = sbr.rel target = $region3
    $region8: #{tpu_custom_call.1} parent=1 // loop_exit
      _
    %963 = vsyncpa [#allocation4], 1
    %s964 = scalar_lea.sflag [#allocation4], 1
    %965 = vsyncpa %s964, 1
    %966 = vsyncpa [#allocation7], 1
    %967 = vsyncpa [#allocation5], 1
    %s968 = scalar_lea.sflag [#allocation5], 1
    %969 = vsyncpa %s968, 1
    %970 = vsyncpa [#allocation11], 1
    %s971 = scalar_lea.sflag [#allocation11], 1
    %972 = vsyncpa %s971, 1

</llo_original>
